<compile_context>
chip_gen: v6e
topology: v6e:2x2x1
jax: 0.10.0
libtpu: 0.0.40
codegen_flags: <defaults>
</compile_context>

<pallas_src>
import math
import jax
import jax.numpy as jnp
from jax.experimental import pallas as pl
from jax.experimental.pallas import tpu as pltpu

SPLIT = 2  # split_size: qkv out dim 6 -> q, k, v each of width 2


def attn_kernel(p_ref, x_ref, o_ref):
    # p_ref: SMEM (D+S+2, 6) packed params
    #   rows [0, D)        : w_qkv^T               (D, 6)
    #   row  D             : b_qkv                 (6,)
    #   rows [D+1, D+1+S)  : w_attn^T * SPLIT      (S, O)   <- scale folded in
    #   row  D+1+S         : b_attn                (O,)
    # x_ref: VMEM (D, S, TB)   -- batch on lanes
    # o_ref: VMEM (O, S, TB)   -- batch on lanes
    D, S, TB = x_ref.shape
    O = o_ref.shape[0]
    b_row = D
    a_row = D + 1
    ab_row = D + 1 + S

    xs = [x_ref[d] for d in range(D)]  # D x (S, TB) lane-dense tiles

    def feat(f):
        # qkv[:, f] = sum_d x[:, d] * Wqkv^T[d, f] + bqkv[f]  (VPU scalar*vreg FMA)
        acc = xs[0] * p_ref[0, f]
        for d in range(1, D):
            acc = acc + xs[d] * p_ref[d, f]
        return acc + p_ref[b_row, f]

    # q features 0..SPLIT-1, k features SPLIT..2*SPLIT-1; v features are dead code.
    qs = [feat(j) for j in range(SPLIT)]
    ks = [feat(SPLIT + j) for j in range(SPLIT)]

    # logits_o = sum_j q_j * (sum_t k_j[t] * Wattn_scaled[t, o]) + battn[o]
    logits = []
    for o in range(O):
        acc = None
        for j in range(SPLIT):
            c = ks[j][0:1, :] * p_ref[a_row + 0, o]          # (1, TB)
            for t in range(1, S):
                c = c + ks[j][t:t + 1, :] * p_ref[a_row + t, o]
            term = qs[j] * c                                 # (S, TB)
            acc = term if acc is None else acc + term
        logits.append(acc + p_ref[ab_row, o])

    # softmax over the O logits (numerically stable, exact reciprocal)
    m = logits[0]
    for o in range(1, O):
        m = jnp.maximum(m, logits[o])
    es = [jnp.exp(l - m) for l in logits]
    tot = es[0]
    for o in range(1, O):
        tot = tot + es[o]
    inv = 1.0 / tot
    for o in range(O):
        o_ref[o] = (es[o] * inv).astype(o_ref.dtype)


def model_forward(x, w_qkv, b_qkv, w_attn, b_attn, *, tb=256):
    B, S, D = x.shape
    O = w_attn.shape[0]                 # 3
    assert w_attn.shape[1] == S, "attn Linear(6,3) requires sequence length 6"

    # Pack all parameters into one small SMEM array (one transfer, not four).
    n_qkv_out = 3 * SPLIT               # 6
    prows = D + S + 2                   # 11
    pcols = max(n_qkv_out, O)           # 6
    params = jnp.zeros((prows, pcols), jnp.float32)
    params = params.at[0:D, 0:n_qkv_out].set(w_qkv.T.astype(jnp.float32))
    params = params.at[D, 0:n_qkv_out].set(b_qkv.astype(jnp.float32))
    params = params.at[D + 1:D + 1 + S, 0:O].set(
        (w_attn.T * float(SPLIT)).astype(jnp.float32))       # fold the 2x score scale
    params = params.at[D + 1 + S, 0:O].set(b_attn.astype(jnp.float32))

    # Lane-dense layout: batch on the last (lane) dim; pad batch to a tile multiple.
    bp = ((B + tb - 1) // tb) * tb
    x_t = jnp.transpose(x.astype(jnp.float32), (2, 1, 0))    # (D, S, B)
    if bp != B:
        x_t = jnp.pad(x_t, ((0, 0), (0, 0), (0, bp - B)))

    out_t = pl.pallas_call(
        attn_kernel,
        out_shape=jax.ShapeDtypeStruct((O, S, bp), jnp.float32),
        grid=(bp // tb,),
        in_specs=[
            pl.BlockSpec(memory_space=pltpu.MemorySpace.SMEM),   # packed params
            pl.BlockSpec((D, S, tb), lambda i: (0, 0, i)),
        ],
        out_specs=pl.BlockSpec((O, S, tb), lambda i: (0, 0, i)),
        compiler_params=pltpu.CompilerParams(dimension_semantics=("parallel",)),
    )(params, x_t)

    out = jnp.transpose(out_t[:, :, :B], (2, 1, 0))           # (B, S, O)
    return out.astype(x.dtype)


def _linear_init(key, out_features, in_features):
    # Deterministic nn.Linear-style init: U(-1/sqrt(in), 1/sqrt(in)).
    kw, kb = jax.random.split(key)
    bound = 1.0 / math.sqrt(in_features)
    w = jax.random.uniform(kw, (out_features, in_features), jnp.float32, -bound, bound)
    b = jax.random.uniform(kb, (out_features,), jnp.float32, -bound, bound)
    return w, b


if __name__ == "__main__":
    key = jax.random.PRNGKey(0)
    kx, kqkv, kattn = jax.random.split(key, 3)

    # S must be 6 for attn Linear(6, 3); batch is tiled 256 per grid step -> grid (2,)
    B, S, D = 512, 6, 3
    x = jax.random.normal(kx, (B, S, D), dtype=jnp.float32)

    w_qkv, b_qkv = _linear_init(kqkv, 6, 3)     # nn.Linear(3, 6)
    w_attn, b_attn = _linear_init(kattn, 3, 6)  # nn.Linear(6, 3)

    out = model_forward(x, w_qkv, b_qkv, w_attn, b_attn, tb=256)
    jax.block_until_ready(out)

    # pure-JAX reference mirroring the PyTorch forward exactly
    scale = math.sqrt(float(SPLIT))
    qkv = x @ w_qkv.T + b_qkv
    q = qkv[..., 0:SPLIT] * scale
    k = qkv[..., SPLIT:2 * SPLIT] * scale
    # (v is scaled but unused in the reference module)
    ref = jax.nn.softmax(jnp.einsum("bsd,btd->bst", q, k) @ w_attn.T + b_attn, axis=-1)

    assert out.shape == ref.shape
    assert jnp.allclose(out, ref, atol=1e-5, rtol=1e-5)

    print("KERNEL_OK")
</pallas_src>

<mosaic_0001>
module attributes {stable_mosaic.version = 11 : i64} {
  func.func @attn_kernel(%arg0: i32, %arg1: memref<11x6xf32, #tpu.memory_space<smem>>, %arg2: memref<3x6x256xf32, #tpu.memory_space<vmem>>, %arg3: memref<3x6x256xf32, #tpu.memory_space<vmem>>) attributes {dimension_semantics = [#tpu.dimension_semantics<parallel>], iteration_bounds = array<i64: 2>, scalar_prefetch = 0 : i64, scratch_operands = 0 : i64, tpu.core_type = #tpu.core_type<tc>, window_params = [{transform_indices = @transform_0, window_bounds = array<i64: 11, 6>}, {transform_indices = @transform_1, window_bounds = array<i64: 3, 6, 256>}, {transform_indices = @transform_2, window_bounds = array<i64: 3, 6, 256>}]} {
    %c0 = arith.constant 0 : index
    %c0_0 = arith.constant 0 : index
    %c0_1 = arith.constant 0 : index
    %0 = vector.load %arg2[%c0, %c0_0, %c0_1] : memref<3x6x256xf32, #tpu.memory_space<vmem>>, vector<1x6x256xf32>
    %1 = vector.shape_cast %0 : vector<1x6x256xf32> to vector<6x256xf32>
    %c1 = arith.constant 1 : index
    %c0_2 = arith.constant 0 : index
    %c0_3 = arith.constant 0 : index
    %2 = vector.load %arg2[%c1, %c0_2, %c0_3] : memref<3x6x256xf32, #tpu.memory_space<vmem>>, vector<1x6x256xf32>
    %3 = vector.shape_cast %2 : vector<1x6x256xf32> to vector<6x256xf32>
    %c2 = arith.constant 2 : index
    %c0_4 = arith.constant 0 : index
    %c0_5 = arith.constant 0 : index
    %4 = vector.load %arg2[%c2, %c0_4, %c0_5] : memref<3x6x256xf32, #tpu.memory_space<vmem>>, vector<1x6x256xf32>
    %5 = vector.shape_cast %4 : vector<1x6x256xf32> to vector<6x256xf32>
    %c0_6 = arith.constant 0 : index
    %c0_7 = arith.constant 0 : index
    %6 = memref.load %arg1[%c0_6, %c0_7] : memref<11x6xf32, #tpu.memory_space<smem>>
    %7 = vector.broadcast %6 : f32 to vector<6x256xf32>
    %8 = arith.mulf %1, %7 : vector<6x256xf32>
    %c1_8 = arith.constant 1 : index
    %c0_9 = arith.constant 0 : index
    %9 = memref.load %arg1[%c1_8, %c0_9] : memref<11x6xf32, #tpu.memory_space<smem>>
    %10 = vector.broadcast %9 : f32 to vector<6x256xf32>
    %11 = arith.mulf %3, %10 : vector<6x256xf32>
    %12 = arith.addf %8, %11 : vector<6x256xf32>
    %c2_10 = arith.constant 2 : index
    %c0_11 = arith.constant 0 : index
    %13 = memref.load %arg1[%c2_10, %c0_11] : memref<11x6xf32, #tpu.memory_space<smem>>
    %14 = vector.broadcast %13 : f32 to vector<6x256xf32>
    %15 = arith.mulf %5, %14 : vector<6x256xf32>
    %16 = arith.addf %12, %15 : vector<6x256xf32>
    %c3 = arith.constant 3 : index
    %c0_12 = arith.constant 0 : index
    %17 = memref.load %arg1[%c3, %c0_12] : memref<11x6xf32, #tpu.memory_space<smem>>
    %18 = vector.broadcast %17 : f32 to vector<6x256xf32>
    %19 = arith.addf %16, %18 : vector<6x256xf32>
    %c0_13 = arith.constant 0 : index
    %c1_14 = arith.constant 1 : index
    %20 = memref.load %arg1[%c0_13, %c1_14] : memref<11x6xf32, #tpu.memory_space<smem>>
    %21 = vector.broadcast %20 : f32 to vector<6x256xf32>
    %22 = arith.mulf %1, %21 : vector<6x256xf32>
    %c1_15 = arith.constant 1 : index
    %c1_16 = arith.constant 1 : index
    %23 = memref.load %arg1[%c1_15, %c1_16] : memref<11x6xf32, #tpu.memory_space<smem>>
    %24 = vector.broadcast %23 : f32 to vector<6x256xf32>
    %25 = arith.mulf %3, %24 : vector<6x256xf32>
    %26 = arith.addf %22, %25 : vector<6x256xf32>
    %c2_17 = arith.constant 2 : index
    %c1_18 = arith.constant 1 : index
    %27 = memref.load %arg1[%c2_17, %c1_18] : memref<11x6xf32, #tpu.memory_space<smem>>
    %28 = vector.broadcast %27 : f32 to vector<6x256xf32>
    %29 = arith.mulf %5, %28 : vector<6x256xf32>
    %30 = arith.addf %26, %29 : vector<6x256xf32>
    %c3_19 = arith.constant 3 : index
    %c1_20 = arith.constant 1 : index
    %31 = memref.load %arg1[%c3_19, %c1_20] : memref<11x6xf32, #tpu.memory_space<smem>>
    %32 = vector.broadcast %31 : f32 to vector<6x256xf32>
    %33 = arith.addf %30, %32 : vector<6x256xf32>
    %c0_21 = arith.constant 0 : index
    %c2_22 = arith.constant 2 : index
    %34 = memref.load %arg1[%c0_21, %c2_22] : memref<11x6xf32, #tpu.memory_space<smem>>
    %35 = vector.broadcast %34 : f32 to vector<6x256xf32>
    %36 = arith.mulf %1, %35 : vector<6x256xf32>
    %c1_23 = arith.constant 1 : index
    %c2_24 = arith.constant 2 : index
    %37 = memref.load %arg1[%c1_23, %c2_24] : memref<11x6xf32, #tpu.memory_space<smem>>
    %38 = vector.broadcast %37 : f32 to vector<6x256xf32>
    %39 = arith.mulf %3, %38 : vector<6x256xf32>
    %40 = arith.addf %36, %39 : vector<6x256xf32>
    %c2_25 = arith.constant 2 : index
    %c2_26 = arith.constant 2 : index
    %41 = memref.load %arg1[%c2_25, %c2_26] : memref<11x6xf32, #tpu.memory_space<smem>>
    %42 = vector.broadcast %41 : f32 to vector<6x256xf32>
    %43 = arith.mulf %5, %42 : vector<6x256xf32>
    %44 = arith.addf %40, %43 : vector<6x256xf32>
    %c3_27 = arith.constant 3 : index
    %c2_28 = arith.constant 2 : index
    %45 = memref.load %arg1[%c3_27, %c2_28] : memref<11x6xf32, #tpu.memory_space<smem>>
    %46 = vector.broadcast %45 : f32 to vector<6x256xf32>
    %47 = arith.addf %44, %46 : vector<6x256xf32>
    %c0_29 = arith.constant 0 : index
    %c3_30 = arith.constant 3 : index
    %48 = memref.load %arg1[%c0_29, %c3_30] : memref<11x6xf32, #tpu.memory_space<smem>>
    %49 = vector.broadcast %48 : f32 to vector<6x256xf32>
    %50 = arith.mulf %1, %49 : vector<6x256xf32>
    %c1_31 = arith.constant 1 : index
    %c3_32 = arith.constant 3 : index
    %51 = memref.load %arg1[%c1_31, %c3_32] : memref<11x6xf32, #tpu.memory_space<smem>>
    %52 = vector.broadcast %51 : f32 to vector<6x256xf32>
    %53 = arith.mulf %3, %52 : vector<6x256xf32>
    %54 = arith.addf %50, %53 : vector<6x256xf32>
    %c2_33 = arith.constant 2 : index
    %c3_34 = arith.constant 3 : index
    %55 = memref.load %arg1[%c2_33, %c3_34] : memref<11x6xf32, #tpu.memory_space<smem>>
    %56 = vector.broadcast %55 : f32 to vector<6x256xf32>
    %57 = arith.mulf %5, %56 : vector<6x256xf32>
    %58 = arith.addf %54, %57 : vector<6x256xf32>
    %c3_35 = arith.constant 3 : index
    %c3_36 = arith.constant 3 : index
    %59 = memref.load %arg1[%c3_35, %c3_36] : memref<11x6xf32, #tpu.memory_space<smem>>
    %60 = vector.broadcast %59 : f32 to vector<6x256xf32>
    %61 = arith.addf %58, %60 : vector<6x256xf32>
    %62 = vector.extract_strided_slice %47 {offsets = [0, 0], sizes = [1, 256], strides = [1, 1]} : vector<6x256xf32> to vector<1x256xf32>
    %c4 = arith.constant 4 : index
    %c0_37 = arith.constant 0 : index
    %63 = memref.load %arg1[%c4, %c0_37] : memref<11x6xf32, #tpu.memory_space<smem>>
    %64 = vector.broadcast %63 : f32 to vector<1x256xf32>
    %65 = arith.mulf %62, %64 : vector<1x256xf32>
    %66 = vector.extract_strided_slice %47 {offsets = [1, 0], sizes = [1, 256], strides = [1, 1]} : vector<6x256xf32> to vector<1x256xf32>
    %c5 = arith.constant 5 : index
    %c0_38 = arith.constant 0 : index
    %67 = memref.load %arg1[%c5, %c0_38] : memref<11x6xf32, #tpu.memory_space<smem>>
    %68 = vector.broadcast %67 : f32 to vector<1x256xf32>
    %69 = arith.mulf %66, %68 : vector<1x256xf32>
    %70 = arith.addf %65, %69 : vector<1x256xf32>
    %71 = vector.extract_strided_slice %47 {offsets = [2, 0], sizes = [1, 256], strides = [1, 1]} : vector<6x256xf32> to vector<1x256xf32>
    %c6 = arith.constant 6 : index
    %c0_39 = arith.constant 0 : index
    %72 = memref.load %arg1[%c6, %c0_39] : memref<11x6xf32, #tpu.memory_space<smem>>
    %73 = vector.broadcast %72 : f32 to vector<1x256xf32>
    %74 = arith.mulf %71, %73 : vector<1x256xf32>
    %75 = arith.addf %70, %74 : vector<1x256xf32>
    %76 = vector.extract_strided_slice %47 {offsets = [3, 0], sizes = [1, 256], strides = [1, 1]} : vector<6x256xf32> to vector<1x256xf32>
    %c7 = arith.constant 7 : index
    %c0_40 = arith.constant 0 : index
    %77 = memref.load %arg1[%c7, %c0_40] : memref<11x6xf32, #tpu.memory_space<smem>>
    %78 = vector.broadcast %77 : f32 to vector<1x256xf32>
    %79 = arith.mulf %76, %78 : vector<1x256xf32>
    %80 = arith.addf %75, %79 : vector<1x256xf32>
    %81 = vector.extract_strided_slice %47 {offsets = [4, 0], sizes = [1, 256], strides = [1, 1]} : vector<6x256xf32> to vector<1x256xf32>
    %c8 = arith.constant 8 : index
    %c0_41 = arith.constant 0 : index
    %82 = memref.load %arg1[%c8, %c0_41] : memref<11x6xf32, #tpu.memory_space<smem>>
    %83 = vector.broadcast %82 : f32 to vector<1x256xf32>
    %84 = arith.mulf %81, %83 : vector<1x256xf32>
    %85 = arith.addf %80, %84 : vector<1x256xf32>
    %86 = vector.extract_strided_slice %47 {offsets = [5, 0], sizes = [1, 256], strides = [1, 1]} : vector<6x256xf32> to vector<1x256xf32>
    %c9 = arith.constant 9 : index
    %c0_42 = arith.constant 0 : index
    %87 = memref.load %arg1[%c9, %c0_42] : memref<11x6xf32, #tpu.memory_space<smem>>
    %88 = vector.broadcast %87 : f32 to vector<1x256xf32>
    %89 = arith.mulf %86, %88 : vector<1x256xf32>
    %90 = arith.addf %85, %89 : vector<1x256xf32>
    %91 = vector.broadcast %90 : vector<1x256xf32> to vector<6x256xf32>
    %92 = arith.mulf %19, %91 : vector<6x256xf32>
    %93 = vector.extract_strided_slice %61 {offsets = [0, 0], sizes = [1, 256], strides = [1, 1]} : vector<6x256xf32> to vector<1x256xf32>
    %c4_43 = arith.constant 4 : index
    %c0_44 = arith.constant 0 : index
    %94 = memref.load %arg1[%c4_43, %c0_44] : memref<11x6xf32, #tpu.memory_space<smem>>
    %95 = vector.broadcast %94 : f32 to vector<1x256xf32>
    %96 = arith.mulf %93, %95 : vector<1x256xf32>
    %97 = vector.extract_strided_slice %61 {offsets = [1, 0], sizes = [1, 256], strides = [1, 1]} : vector<6x256xf32> to vector<1x256xf32>
    %c5_45 = arith.constant 5 : index
    %c0_46 = arith.constant 0 : index
    %98 = memref.load %arg1[%c5_45, %c0_46] : memref<11x6xf32, #tpu.memory_space<smem>>
    %99 = vector.broadcast %98 : f32 to vector<1x256xf32>
    %100 = arith.mulf %97, %99 : vector<1x256xf32>
    %101 = arith.addf %96, %100 : vector<1x256xf32>
    %102 = vector.extract_strided_slice %61 {offsets = [2, 0], sizes = [1, 256], strides = [1, 1]} : vector<6x256xf32> to vector<1x256xf32>
    %c6_47 = arith.constant 6 : index
    %c0_48 = arith.constant 0 : index
    %103 = memref.load %arg1[%c6_47, %c0_48] : memref<11x6xf32, #tpu.memory_space<smem>>
    %104 = vector.broadcast %103 : f32 to vector<1x256xf32>
    %105 = arith.mulf %102, %104 : vector<1x256xf32>
    %106 = arith.addf %101, %105 : vector<1x256xf32>
    %107 = vector.extract_strided_slice %61 {offsets = [3, 0], sizes = [1, 256], strides = [1, 1]} : vector<6x256xf32> to vector<1x256xf32>
    %c7_49 = arith.constant 7 : index
    %c0_50 = arith.constant 0 : index
    %108 = memref.load %arg1[%c7_49, %c0_50] : memref<11x6xf32, #tpu.memory_space<smem>>
    %109 = vector.broadcast %108 : f32 to vector<1x256xf32>
    %110 = arith.mulf %107, %109 : vector<1x256xf32>
    %111 = arith.addf %106, %110 : vector<1x256xf32>
    %112 = vector.extract_strided_slice %61 {offsets = [4, 0], sizes = [1, 256], strides = [1, 1]} : vector<6x256xf32> to vector<1x256xf32>
    %c8_51 = arith.constant 8 : index
    %c0_52 = arith.constant 0 : index
    %113 = memref.load %arg1[%c8_51, %c0_52] : memref<11x6xf32, #tpu.memory_space<smem>>
    %114 = vector.broadcast %113 : f32 to vector<1x256xf32>
    %115 = arith.mulf %112, %114 : vector<1x256xf32>
    %116 = arith.addf %111, %115 : vector<1x256xf32>
    %117 = vector.extract_strided_slice %61 {offsets = [5, 0], sizes = [1, 256], strides = [1, 1]} : vector<6x256xf32> to vector<1x256xf32>
    %c9_53 = arith.constant 9 : index
    %c0_54 = arith.constant 0 : index
    %118 = memref.load %arg1[%c9_53, %c0_54] : memref<11x6xf32, #tpu.memory_space<smem>>
    %119 = vector.broadcast %118 : f32 to vector<1x256xf32>
    %120 = arith.mulf %117, %119 : vector<1x256xf32>
    %121 = arith.addf %116, %120 : vector<1x256xf32>
    %122 = vector.broadcast %121 : vector<1x256xf32> to vector<6x256xf32>
    %123 = arith.mulf %33, %122 : vector<6x256xf32>
    %124 = arith.addf %92, %123 : vector<6x256xf32>
    %c10 = arith.constant 10 : index
    %c0_55 = arith.constant 0 : index
    %125 = memref.load %arg1[%c10, %c0_55] : memref<11x6xf32, #tpu.memory_space<smem>>
    %126 = vector.broadcast %125 : f32 to vector<6x256xf32>
    %127 = arith.addf %124, %126 : vector<6x256xf32>
    %128 = vector.extract_strided_slice %47 {offsets = [0, 0], sizes = [1, 256], strides = [1, 1]} : vector<6x256xf32> to vector<1x256xf32>
    %c4_56 = arith.constant 4 : index
    %c1_57 = arith.constant 1 : index
    %129 = memref.load %arg1[%c4_56, %c1_57] : memref<11x6xf32, #tpu.memory_space<smem>>
    %130 = vector.broadcast %129 : f32 to vector<1x256xf32>
    %131 = arith.mulf %128, %130 : vector<1x256xf32>
    %132 = vector.extract_strided_slice %47 {offsets = [1, 0], sizes = [1, 256], strides = [1, 1]} : vector<6x256xf32> to vector<1x256xf32>
    %c5_58 = arith.constant 5 : index
    %c1_59 = arith.constant 1 : index
    %133 = memref.load %arg1[%c5_58, %c1_59] : memref<11x6xf32, #tpu.memory_space<smem>>
    %134 = vector.broadcast %133 : f32 to vector<1x256xf32>
    %135 = arith.mulf %132, %134 : vector<1x256xf32>
    %136 = arith.addf %131, %135 : vector<1x256xf32>
    %137 = vector.extract_strided_slice %47 {offsets = [2, 0], sizes = [1, 256], strides = [1, 1]} : vector<6x256xf32> to vector<1x256xf32>
    %c6_60 = arith.constant 6 : index
    %c1_61 = arith.constant 1 : index
    %138 = memref.load %arg1[%c6_60, %c1_61] : memref<11x6xf32, #tpu.memory_space<smem>>
    %139 = vector.broadcast %138 : f32 to vector<1x256xf32>
    %140 = arith.mulf %137, %139 : vector<1x256xf32>
    %141 = arith.addf %136, %140 : vector<1x256xf32>
    %142 = vector.extract_strided_slice %47 {offsets = [3, 0], sizes = [1, 256], strides = [1, 1]} : vector<6x256xf32> to vector<1x256xf32>
    %c7_62 = arith.constant 7 : index
    %c1_63 = arith.constant 1 : index
    %143 = memref.load %arg1[%c7_62, %c1_63] : memref<11x6xf32, #tpu.memory_space<smem>>
    %144 = vector.broadcast %143 : f32 to vector<1x256xf32>
    %145 = arith.mulf %142, %144 : vector<1x256xf32>
    %146 = arith.addf %141, %145 : vector<1x256xf32>
    %147 = vector.extract_strided_slice %47 {offsets = [4, 0], sizes = [1, 256], strides = [1, 1]} : vector<6x256xf32> to vector<1x256xf32>
    %c8_64 = arith.constant 8 : index
    %c1_65 = arith.constant 1 : index
    %148 = memref.load %arg1[%c8_64, %c1_65] : memref<11x6xf32, #tpu.memory_space<smem>>
    %149 = vector.broadcast %148 : f32 to vector<1x256xf32>
    %150 = arith.mulf %147, %149 : vector<1x256xf32>
    %151 = arith.addf %146, %150 : vector<1x256xf32>
    %152 = vector.extract_strided_slice %47 {offsets = [5, 0], sizes = [1, 256], strides = [1, 1]} : vector<6x256xf32> to vector<1x256xf32>
    %c9_66 = arith.constant 9 : index
    %c1_67 = arith.constant 1 : index
    %153 = memref.load %arg1[%c9_66, %c1_67] : memref<11x6xf32, #tpu.memory_space<smem>>
    %154 = vector.broadcast %153 : f32 to vector<1x256xf32>
    %155 = arith.mulf %152, %154 : vector<1x256xf32>
    %156 = arith.addf %151, %155 : vector<1x256xf32>
    %157 = vector.broadcast %156 : vector<1x256xf32> to vector<6x256xf32>
    %158 = arith.mulf %19, %157 : vector<6x256xf32>
    %159 = vector.extract_strided_slice %61 {offsets = [0, 0], sizes = [1, 256], strides = [1, 1]} : vector<6x256xf32> to vector<1x256xf32>
    %c4_68 = arith.constant 4 : index
    %c1_69 = arith.constant 1 : index
    %160 = memref.load %arg1[%c4_68, %c1_69] : memref<11x6xf32, #tpu.memory_space<smem>>
    %161 = vector.broadcast %160 : f32 to vector<1x256xf32>
    %162 = arith.mulf %159, %161 : vector<1x256xf32>
    %163 = vector.extract_strided_slice %61 {offsets = [1, 0], sizes = [1, 256], strides = [1, 1]} : vector<6x256xf32> to vector<1x256xf32>
    %c5_70 = arith.constant 5 : index
    %c1_71 = arith.constant 1 : index
    %164 = memref.load %arg1[%c5_70, %c1_71] : memref<11x6xf32, #tpu.memory_space<smem>>
    %165 = vector.broadcast %164 : f32 to vector<1x256xf32>
    %166 = arith.mulf %163, %165 : vector<1x256xf32>
    %167 = arith.addf %162, %166 : vector<1x256xf32>
    %168 = vector.extract_strided_slice %61 {offsets = [2, 0], sizes = [1, 256], strides = [1, 1]} : vector<6x256xf32> to vector<1x256xf32>
    %c6_72 = arith.constant 6 : index
    %c1_73 = arith.constant 1 : index
    %169 = memref.load %arg1[%c6_72, %c1_73] : memref<11x6xf32, #tpu.memory_space<smem>>
    %170 = vector.broadcast %169 : f32 to vector<1x256xf32>
    %171 = arith.mulf %168, %170 : vector<1x256xf32>
    %172 = arith.addf %167, %171 : vector<1x256xf32>
    %173 = vector.extract_strided_slice %61 {offsets = [3, 0], sizes = [1, 256], strides = [1, 1]} : vector<6x256xf32> to vector<1x256xf32>
    %c7_74 = arith.constant 7 : index
    %c1_75 = arith.constant 1 : index
    %174 = memref.load %arg1[%c7_74, %c1_75] : memref<11x6xf32, #tpu.memory_space<smem>>
    %175 = vector.broadcast %174 : f32 to vector<1x256xf32>
    %176 = arith.mulf %173, %175 : vector<1x256xf32>
    %177 = arith.addf %172, %176 : vector<1x256xf32>
    %178 = vector.extract_strided_slice %61 {offsets = [4, 0], sizes = [1, 256], strides = [1, 1]} : vector<6x256xf32> to vector<1x256xf32>
    %c8_76 = arith.constant 8 : index
    %c1_77 = arith.constant 1 : index
    %179 = memref.load %arg1[%c8_76, %c1_77] : memref<11x6xf32, #tpu.memory_space<smem>>
    %180 = vector.broadcast %179 : f32 to vector<1x256xf32>
    %181 = arith.mulf %178, %180 : vector<1x256xf32>
    %182 = arith.addf %177, %181 : vector<1x256xf32>
    %183 = vector.extract_strided_slice %61 {offsets = [5, 0], sizes = [1, 256], strides = [1, 1]} : vector<6x256xf32> to vector<1x256xf32>
    %c9_78 = arith.constant 9 : index
    %c1_79 = arith.constant 1 : index
    %184 = memref.load %arg1[%c9_78, %c1_79] : memref<11x6xf32, #tpu.memory_space<smem>>
    %185 = vector.broadcast %184 : f32 to vector<1x256xf32>
    %186 = arith.mulf %183, %185 : vector<1x256xf32>
    %187 = arith.addf %182, %186 : vector<1x256xf32>
    %188 = vector.broadcast %187 : vector<1x256xf32> to vector<6x256xf32>
    %189 = arith.mulf %33, %188 : vector<6x256xf32>
    %190 = arith.addf %158, %189 : vector<6x256xf32>
    %c10_80 = arith.constant 10 : index
    %c1_81 = arith.constant 1 : index
    %191 = memref.load %arg1[%c10_80, %c1_81] : memref<11x6xf32, #tpu.memory_space<smem>>
    %192 = vector.broadcast %191 : f32 to vector<6x256xf32>
    %193 = arith.addf %190, %192 : vector<6x256xf32>
    %194 = vector.extract_strided_slice %47 {offsets = [0, 0], sizes = [1, 256], strides = [1, 1]} : vector<6x256xf32> to vector<1x256xf32>
    %c4_82 = arith.constant 4 : index
    %c2_83 = arith.constant 2 : index
    %195 = memref.load %arg1[%c4_82, %c2_83] : memref<11x6xf32, #tpu.memory_space<smem>>
    %196 = vector.broadcast %195 : f32 to vector<1x256xf32>
    %197 = arith.mulf %194, %196 : vector<1x256xf32>
    %198 = vector.extract_strided_slice %47 {offsets = [1, 0], sizes = [1, 256], strides = [1, 1]} : vector<6x256xf32> to vector<1x256xf32>
    %c5_84 = arith.constant 5 : index
    %c2_85 = arith.constant 2 : index
    %199 = memref.load %arg1[%c5_84, %c2_85] : memref<11x6xf32, #tpu.memory_space<smem>>
    %200 = vector.broadcast %199 : f32 to vector<1x256xf32>
    %201 = arith.mulf %198, %200 : vector<1x256xf32>
    %202 = arith.addf %197, %201 : vector<1x256xf32>
    %203 = vector.extract_strided_slice %47 {offsets = [2, 0], sizes = [1, 256], strides = [1, 1]} : vector<6x256xf32> to vector<1x256xf32>
    %c6_86 = arith.constant 6 : index
    %c2_87 = arith.constant 2 : index
    %204 = memref.load %arg1[%c6_86, %c2_87] : memref<11x6xf32, #tpu.memory_space<smem>>
    %205 = vector.broadcast %204 : f32 to vector<1x256xf32>
    %206 = arith.mulf %203, %205 : vector<1x256xf32>
    %207 = arith.addf %202, %206 : vector<1x256xf32>
    %208 = vector.extract_strided_slice %47 {offsets = [3, 0], sizes = [1, 256], strides = [1, 1]} : vector<6x256xf32> to vector<1x256xf32>
    %c7_88 = arith.constant 7 : index
    %c2_89 = arith.constant 2 : index
    %209 = memref.load %arg1[%c7_88, %c2_89] : memref<11x6xf32, #tpu.memory_space<smem>>
    %210 = vector.broadcast %209 : f32 to vector<1x256xf32>
    %211 = arith.mulf %208, %210 : vector<1x256xf32>
    %212 = arith.addf %207, %211 : vector<1x256xf32>
    %213 = vector.extract_strided_slice %47 {offsets = [4, 0], sizes = [1, 256], strides = [1, 1]} : vector<6x256xf32> to vector<1x256xf32>
    %c8_90 = arith.constant 8 : index
    %c2_91 = arith.constant 2 : index
    %214 = memref.load %arg1[%c8_90, %c2_91] : memref<11x6xf32, #tpu.memory_space<smem>>
    %215 = vector.broadcast %214 : f32 to vector<1x256xf32>
    %216 = arith.mulf %213, %215 : vector<1x256xf32>
    %217 = arith.addf %212, %216 : vector<1x256xf32>
    %218 = vector.extract_strided_slice %47 {offsets = [5, 0], sizes = [1, 256], strides = [1, 1]} : vector<6x256xf32> to vector<1x256xf32>
    %c9_92 = arith.constant 9 : index
    %c2_93 = arith.constant 2 : index
    %219 = memref.load %arg1[%c9_92, %c2_93] : memref<11x6xf32, #tpu.memory_space<smem>>
    %220 = vector.broadcast %219 : f32 to vector<1x256xf32>
    %221 = arith.mulf %218, %220 : vector<1x256xf32>
    %222 = arith.addf %217, %221 : vector<1x256xf32>
    %223 = vector.broadcast %222 : vector<1x256xf32> to vector<6x256xf32>
    %224 = arith.mulf %19, %223 : vector<6x256xf32>
    %225 = vector.extract_strided_slice %61 {offsets = [0, 0], sizes = [1, 256], strides = [1, 1]} : vector<6x256xf32> to vector<1x256xf32>
    %c4_94 = arith.constant 4 : index
    %c2_95 = arith.constant 2 : index
    %226 = memref.load %arg1[%c4_94, %c2_95] : memref<11x6xf32, #tpu.memory_space<smem>>
    %227 = vector.broadcast %226 : f32 to vector<1x256xf32>
    %228 = arith.mulf %225, %227 : vector<1x256xf32>
    %229 = vector.extract_strided_slice %61 {offsets = [1, 0], sizes = [1, 256], strides = [1, 1]} : vector<6x256xf32> to vector<1x256xf32>
    %c5_96 = arith.constant 5 : index
    %c2_97 = arith.constant 2 : index
    %230 = memref.load %arg1[%c5_96, %c2_97] : memref<11x6xf32, #tpu.memory_space<smem>>
    %231 = vector.broadcast %230 : f32 to vector<1x256xf32>
    %232 = arith.mulf %229, %231 : vector<1x256xf32>
    %233 = arith.addf %228, %232 : vector<1x256xf32>
    %234 = vector.extract_strided_slice %61 {offsets = [2, 0], sizes = [1, 256], strides = [1, 1]} : vector<6x256xf32> to vector<1x256xf32>
    %c6_98 = arith.constant 6 : index
    %c2_99 = arith.constant 2 : index
    %235 = memref.load %arg1[%c6_98, %c2_99] : memref<11x6xf32, #tpu.memory_space<smem>>
    %236 = vector.broadcast %235 : f32 to vector<1x256xf32>
    %237 = arith.mulf %234, %236 : vector<1x256xf32>
    %238 = arith.addf %233, %237 : vector<1x256xf32>
    %239 = vector.extract_strided_slice %61 {offsets = [3, 0], sizes = [1, 256], strides = [1, 1]} : vector<6x256xf32> to vector<1x256xf32>
    %c7_100 = arith.constant 7 : index
    %c2_101 = arith.constant 2 : index
    %240 = memref.load %arg1[%c7_100, %c2_101] : memref<11x6xf32, #tpu.memory_space<smem>>
    %241 = vector.broadcast %240 : f32 to vector<1x256xf32>
    %242 = arith.mulf %239, %241 : vector<1x256xf32>
    %243 = arith.addf %238, %242 : vector<1x256xf32>
    %244 = vector.extract_strided_slice %61 {offsets = [4, 0], sizes = [1, 256], strides = [1, 1]} : vector<6x256xf32> to vector<1x256xf32>
    %c8_102 = arith.constant 8 : index
    %c2_103 = arith.constant 2 : index
    %245 = memref.load %arg1[%c8_102, %c2_103] : memref<11x6xf32, #tpu.memory_space<smem>>
    %246 = vector.broadcast %245 : f32 to vector<1x256xf32>
    %247 = arith.mulf %244, %246 : vector<1x256xf32>
    %248 = arith.addf %243, %247 : vector<1x256xf32>
    %249 = vector.extract_strided_slice %61 {offsets = [5, 0], sizes = [1, 256], strides = [1, 1]} : vector<6x256xf32> to vector<1x256xf32>
    %c9_104 = arith.constant 9 : index
    %c2_105 = arith.constant 2 : index
    %250 = memref.load %arg1[%c9_104, %c2_105] : memref<11x6xf32, #tpu.memory_space<smem>>
    %251 = vector.broadcast %250 : f32 to vector<1x256xf32>
    %252 = arith.mulf %249, %251 : vector<1x256xf32>
    %253 = arith.addf %248, %252 : vector<1x256xf32>
    %254 = vector.broadcast %253 : vector<1x256xf32> to vector<6x256xf32>
    %255 = arith.mulf %33, %254 : vector<6x256xf32>
    %256 = arith.addf %224, %255 : vector<6x256xf32>
    %c10_106 = arith.constant 10 : index
    %c2_107 = arith.constant 2 : index
    %257 = memref.load %arg1[%c10_106, %c2_107] : memref<11x6xf32, #tpu.memory_space<smem>>
    %258 = vector.broadcast %257 : f32 to vector<6x256xf32>
    %259 = arith.addf %256, %258 : vector<6x256xf32>
    %260 = arith.maximumf %127, %193 : vector<6x256xf32>
    %261 = arith.maximumf %260, %259 : vector<6x256xf32>
    %262 = arith.subf %127, %261 : vector<6x256xf32>
    %263 = math.exp %262 : vector<6x256xf32>
    %264 = arith.subf %193, %261 : vector<6x256xf32>
    %265 = math.exp %264 : vector<6x256xf32>
    %266 = arith.subf %259, %261 : vector<6x256xf32>
    %267 = math.exp %266 : vector<6x256xf32>
    %268 = arith.addf %263, %265 : vector<6x256xf32>
    %269 = arith.addf %268, %267 : vector<6x256xf32>
    %cst = arith.constant 1.000000e+00 : f32
    %270 = vector.broadcast %cst : f32 to vector<6x256xf32>
    %271 = arith.divf %270, %269 : vector<6x256xf32>
    %272 = arith.mulf %263, %271 : vector<6x256xf32>
    %c0_108 = arith.constant 0 : index
    %c0_109 = arith.constant 0 : index
    %c0_110 = arith.constant 0 : index
    %273 = vector.load %arg3[%c0_108, %c0_109, %c0_110] : memref<3x6x256xf32, #tpu.memory_space<vmem>>, vector<1x6x256xf32>
    %274 = vector.shape_cast %273 : vector<1x6x256xf32> to vector<6x256xf32>
    %275 = vector.shape_cast %272 : vector<6x256xf32> to vector<1x6x256xf32>
    tpu.vector_store %arg3[%c0_108, %c0_109, %c0_110], %275 {strides = array<i32>} : memref<3x6x256xf32, #tpu.memory_space<vmem>>, vector<1x6x256xf32>,
    %276 = arith.mulf %265, %271 : vector<6x256xf32>
    %c1_111 = arith.constant 1 : index
    %c0_112 = arith.constant 0 : index
    %c0_113 = arith.constant 0 : index
    %277 = vector.load %arg3[%c1_111, %c0_112, %c0_113] : memref<3x6x256xf32, #tpu.memory_space<vmem>>, vector<1x6x256xf32>
    %278 = vector.shape_cast %277 : vector<1x6x256xf32> to vector<6x256xf32>
    %279 = vector.shape_cast %276 : vector<6x256xf32> to vector<1x6x256xf32>
    tpu.vector_store %arg3[%c1_111, %c0_112, %c0_113], %279 {strides = array<i32>} : memref<3x6x256xf32, #tpu.memory_space<vmem>>, vector<1x6x256xf32>,
    %280 = arith.mulf %267, %271 : vector<6x256xf32>
    %c2_114 = arith.constant 2 : index
    %c0_115 = arith.constant 0 : index
    %c0_116 = arith.constant 0 : index
    %281 = vector.load %arg3[%c2_114, %c0_115, %c0_116] : memref<3x6x256xf32, #tpu.memory_space<vmem>>, vector<1x6x256xf32>
    %282 = vector.shape_cast %281 : vector<1x6x256xf32> to vector<6x256xf32>
    %283 = vector.shape_cast %280 : vector<6x256xf32> to vector<1x6x256xf32>
    tpu.vector_store %arg3[%c2_114, %c0_115, %c0_116], %283 {strides = array<i32>} : memref<3x6x256xf32, #tpu.memory_space<vmem>>, vector<1x6x256xf32>,
    return
  }
  func.func @transform_0(%arg0: i32) -> (i32, i32) {
    %c0_i32 = arith.constant 0 : i32
    %c0_i32_0 = arith.constant 0 : i32
    %c0_i32_1 = arith.constant 0 : i32
    return %c0_i32, %c0_i32_0 : i32, i32
  }
  func.func @transform_1(%arg0: i32) -> (i32, i32, i32) {
    %c0_i32 = arith.constant 0 : i32
    %c0_i32_0 = arith.constant 0 : i32
    %c0_i32_1 = arith.constant 0 : i32
    return %c0_i32, %c0_i32_0, %arg0 : i32, i32, i32
  }
  func.func @transform_2(%arg0: i32) -> (i32, i32, i32) {
    %c0_i32 = arith.constant 0 : i32
    %c0_i32_0 = arith.constant 0 : i32
    %c0_i32_1 = arith.constant 0 : i32
    return %c0_i32, %c0_i32_0, %arg0 : i32, i32, i32
  }
}

</mosaic_0001>

<llo_original>
// kernel: tpu_custom_call.1
$region0: #{tpu_custom_call.1}
  #allocation0 [shape = 'u32[]', space=smem, size = 0x4, offset = 0x4, fixed_abs, tag = 'smem constant byte address 0x4 - core index']
  #allocation1 [shape = 'u32[144,128]{1,0:T(1,128)}', space=vmem, size = 0x12000, scoped, tag = 'internal scratch']
  %s0 = inlined_call_operand.vmem [shape: f32[11,6], index: 0, kind: input, shape index: {}]
  %s1 = inlined_call_operand.hbm [shape: f32[3,6,512], index: 1, kind: input, shape index: {}]
  %s2 = inlined_call_operand.hbm [shape: f32[3,6,512], index: 2, kind: output, shape index: {}]
  %s3 = sld [smem:[#allocation0]]
  $region49: #{tpu_custom_call.1} parent=0
    _
  %s5 = ssub.s32 1, %s3
  %s6 = scalar_select 0, %s5, %s3
  $region1: #{tpu_custom_call.1} parent=0
    #allocation2 [shape = 'u8[8192]{0}', space=smem, size = 0x2000, scoped, tag = 'input window, operand 0, single buffered']
    #allocation3 [shape = 's32[2]{0}', space=sflag, size = 0x8, scoped, tag = 'scoped memory for tpu_custom_call.1']
    #allocation4 [shape = 's32[2]{0}', space=sflag, size = 0x8, scoped, tag = 'scoped memory for tpu_custom_call.1']
    #allocation5 [shape = 's32[2]{0}', space=sflag, size = 0x8, scoped, tag = 'scoped memory for tpu_custom_call.1']
    #allocation6 [shape = 'u8[49152]{0}', space=vmem, size = 0xc000, scoped, tag = 'input window, operand 1']
    #allocation7 [shape = 'u8[49152]{0}', space=vmem, size = 0xc000, scoped, tag = 'output window, operand 0']
    %7 = vsyncpa [#allocation5], 0
    %8 = vsyncpa [#allocation3], 0
    %s9 = scalar_lea.sflag [#allocation3], 1
    %10 = vsyncpa %s9, 0
    %11 = vsyncpa [#allocation4], 0
    %s12 = scalar_lea.sflag [#allocation4], 1
    %13 = vsyncpa %s12, 0
    loop: start=0, step=1, limit=4
    $region2: #{tpu_custom_call.1} parent=1 // loop_pre_header
      _
    $region3: #{tpu_custom_call.1} parent=1 // loop_header
      %s15 = sphi 0, %s19
      %p16 = scmp.ge.s32.totalorder %s15, 4
      %s23 = sphi 0, %s23
      %s25 = sphi 0, %s23
      %s26 = sphi 0, %s25
      %s40 = sphi 0, %s26
      %s46 = sphi 0, %s48
      %s49 = sphi 0, %s46
      %s50 = sphi 0, %s49
      %s66 = sphi 0, %s50
      %s72 = sphi 0, %s74
      %s75 = sphi 0, %s72
      %s76 = sphi 0, %s75
      %s92 = sphi 0, %s76
    $region4: #{tpu_custom_call.1} parent=1 // loop_header_branch
      %18 = sbr.rel (%p16) target = $region8
    $region5: #{tpu_custom_call.1} parent=1 // loop_body
      %s20 = ssub.s32 %s15, 1
      %s21 = ssub.s32 %s15, 2
      %s22 = sadd.s32 %s15, 1
      %s24 = sadd.s32 %s23, 1
      %p27 = scmp.eq.s32.totalorder %s15, 1
      %p28 = scmp.ne.s32.totalorder %s23, %s25
      %p29 = scmp.eq.s32.totalorder %s15, 0
      %p30 = por %p28, %p29
      %p31 = scmp.ne.s32.totalorder %s23, %s25
      %p32 = scmp.eq.s32.totalorder %s20, 1
      %p33 = por %p31, %p32
      %p34 = scmp.ne.s32.totalorder %s25, %s26
      %p35 = scmp.eq.s32.totalorder %s20, 0
      %p36 = por %p34, %p35
      %p37 = scmp.ne.s32.totalorder %s25, %s26
      %p38 = scmp.eq.s32.totalorder %s21, 1
      %p39 = por %p37, %p38
      %p41 = scmp.ne.s32.totalorder %s26, %s40
      %p42 = scmp.eq.s32.totalorder %s21, 0
      %p43 = por %p41, %p42
      %s44 = ssub.s32 %s15, %s22
      %p45 = scmp.eq.s32.totalorder %s44, 0
      %s47 = sadd.s32 %s46, 1
      %s48 = scalar_select %p45, %s46, %s47
      %p51 = pneg %p45
      %p52 = scmp.eq.s32.totalorder %s15, 1
      %p53 = por %p51, %p52
      %p54 = scmp.ne.s32.totalorder %s46, %s49
      %p55 = scmp.eq.s32.totalorder %s15, 0
      %p56 = por %p54, %p55
      %p57 = scmp.ne.s32.totalorder %s46, %s49
      %p58 = scmp.eq.s32.totalorder %s20, 1
      %p59 = por %p57, %p58
      %p60 = scmp.ne.s32.totalorder %s49, %s50
      %p61 = scmp.eq.s32.totalorder %s20, 0
      %p62 = por %p60, %p61
      %p63 = scmp.ne.s32.totalorder %s49, %s50
      %p64 = scmp.eq.s32.totalorder %s21, 1
      %p65 = por %p63, %p64
      %p67 = scmp.ne.s32.totalorder %s50, %s66
      %p68 = scmp.eq.s32.totalorder %s21, 0
      %p69 = por %p67, %p68
      %s70 = ssub.s32 %s15, %s22
      %p71 = scmp.eq.s32.totalorder %s70, 0
      %s73 = sadd.s32 %s72, 1
      %s74 = scalar_select %p71, %s72, %s73
      %p77 = pneg %p71
      %p78 = scmp.eq.s32.totalorder %s15, 1
      %p79 = por %p77, %p78
      %p80 = scmp.ne.s32.totalorder %s72, %s75
      %p81 = scmp.eq.s32.totalorder %s15, 0
      %p82 = por %p80, %p81
      %p83 = scmp.ne.s32.totalorder %s72, %s75
      %p84 = scmp.eq.s32.totalorder %s20, 1
      %p85 = por %p83, %p84
      %p86 = scmp.ne.s32.totalorder %s75, %s76
      %p87 = scmp.eq.s32.totalorder %s20, 0
      %p88 = por %p86, %p87
      %p89 = scmp.ne.s32.totalorder %s75, %s76
      %p90 = scmp.eq.s32.totalorder %s21, 1
      %p91 = por %p89, %p90
      %p93 = scmp.ne.s32.totalorder %s76, %s92
      %p94 = scmp.eq.s32.totalorder %s21, 0
      %p95 = por %p93, %p94
      %p96 = scmp.le.s32.totalorder 1, %s15
      %p97 = scmp.lt.s32.totalorder %s15, 3
      %p98 = pnand %p96, %p97
      %p99 = pneg %p98
      // Predicated region
      $region9: #{tpu_custom_call.1} parent=5 // pred_check
        _
      $region10: #{tpu_custom_call.1} parent=5 // pred_check_branch
        %101 = sbr.rel (%p98) target = $region12
      $region11: #{tpu_custom_call.1} parent=5 // pred_region
        %s102 = ssub.s32 %s15, 1
        // Predicated region
        $region13: #{tpu_custom_call.1} parent=11 // pred_check
          %p103 = pneg %p36
        $region14: #{tpu_custom_call.1} parent=11 // pred_check_branch
          %105 = sbr.rel (%p103) target = $region16
        $region15: #{tpu_custom_call.1} parent=11 // pred_region
          %s107 = ssub.s32 256, 256
          %108 = vsyncadd [#allocation5], %s107
          %s109 = sshll.u32 %s0, 4
          %s110 = int_to_ptr.vmem [resolvable:$true] %s109
          %115 = dma.vmem_to_smem %s110, 256, [#allocation2], [#allocation5], 128, 128, 8
        $region16: #{tpu_custom_call.1} parent=11 // pred_fallthru
          _
      $region12: #{tpu_custom_call.1} parent=5 // pred_fallthru
        _
      %p116 = scmp.lt.s32.totalorder %s15, 2
      // Predicated region
      $region17: #{tpu_custom_call.1} parent=5 // pred_check
        %p117 = pneg %p116
      $region18: #{tpu_custom_call.1} parent=5 // pred_check_branch
        %119 = sbr.rel (%p117) target = $region20
      $region19: #{tpu_custom_call.1} parent=5 // pred_region
        // Predicated region
        $region21: #{tpu_custom_call.1} parent=19 // pred_check
          %p120 = pneg %p56
        $region22: #{tpu_custom_call.1} parent=19 // pred_check_branch
          %122 = sbr.rel (%p120) target = $region24
        $region23: #{tpu_custom_call.1} parent=19 // pred_region
          %s123 = sand.u32 %s46, 1
          %s124 = scalar_lea.sflag [#allocation3], %s123
          %s125 = sand.u32 %s46, 1
          %s126 = smul.addr %s125, 48
          %s127 = scalar_lea.vmem [#allocation6], %s126
          %s128 = smul.u32 2, %s15
          %s130 = ssub.s32 768, 768
          %131 = vsyncadd %s124, %s130
          %s132 = smul.addr %s128, 128
          %s133 = scalar_lea.hbm %s1, %s132
          %s134 = sshll.u32 %s127, 4
          %s135 = int_to_ptr.vmem [resolvable:$true] %s134
          %140 = dma.hbm_to_vmem [thread:$0]  %s133, 768, %s135, %s124, 512, 256, 16
        $region24: #{tpu_custom_call.1} parent=19 // pred_fallthru
          _
      $region20: #{tpu_custom_call.1} parent=5 // pred_fallthru
        _
      %p141 = scmp.le.s32.totalorder 1, %s15
      %p142 = scmp.lt.s32.totalorder %s15, 3
      %p143 = pnand %p141, %p142
      %p144 = pneg %p143
      // Predicated region
      $region25: #{tpu_custom_call.1} parent=5 // pred_check
        _
      $region26: #{tpu_custom_call.1} parent=5 // pred_check_branch
        %146 = sbr.rel (%p143) target = $region28
      $region27: #{tpu_custom_call.1} parent=5 // pred_region
        %s147 = ssub.s32 %s15, 1
        // Predicated region
        $region29: #{tpu_custom_call.1} parent=27 // pred_check
          %p148 = pneg %p36
        $region30: #{tpu_custom_call.1} parent=27 // pred_check_branch
          %150 = sbr.rel (%p148) target = $region32
        $region31: #{tpu_custom_call.1} parent=27 // pred_region
          %151 = dma.done [#allocation5], 256
        $region32: #{tpu_custom_call.1} parent=27 // pred_fallthru
          _
        %s152 = sand.u32 %s49, 1
        %s153 = scalar_lea.sflag [#allocation3], %s152
        %s154 = sand.u32 %s49, 1
        %s155 = smul.addr %s154, 48
        %s156 = scalar_lea.vmem [#allocation6], %s155
        // Predicated region
        $region33: #{tpu_custom_call.1} parent=27 // pred_check
          %p157 = pneg %p62
        $region34: #{tpu_custom_call.1} parent=27 // pred_check_branch
          %159 = sbr.rel (%p157) target = $region36
        $region35: #{tpu_custom_call.1} parent=27 // pred_region
          %160 = dma.done %s153, 768
        $region36: #{tpu_custom_call.1} parent=27 // pred_fallthru
          _
        %161 = sfence
        %p162 = pneg %p36
        %p163 = pneg %p33
        %s164 = sand.u32 %s49, 1
        %s165 = scalar_lea.sflag [#allocation3], %s164
        %s166 = sand.u32 %s49, 1
        %s167 = smul.addr %s166, 48
        %s168 = scalar_lea.vmem [#allocation6], %s167
        %p169 = pneg %p62
        %p170 = pneg %p59
        %p171 = pneg %p88
        %p172 = pneg %p85
        %s173 = sand.u32 %s75, 1
        %s174 = scalar_lea.sflag [#allocation4], %s173
        %s175 = sand.u32 %s75, 1
        %s176 = smul.addr %s175, 48
        %s177 = scalar_lea.vmem [#allocation7], %s176
        %s178 = smul.u32 2, %s20
        %s179 = smul.u32 2, %s20
        %v180 = vld [vmem:[%s156] sm:$0x3f]
        %v181 = vld [vmem:[%s156 + $0x8] sm:$0x3f]
        %s182 = scalar_lea.vmem %s156, 16 [#allocation6]
        %v183 = vld [vmem:[%s182] sm:$0x3f]
        %v184 = vld [vmem:[%s182 + $0x8] sm:$0x3f]
        %s185 = scalar_lea.vmem %s156, 32 [#allocation6]
        %v186 = vld [vmem:[%s185] sm:$0x3f]
        %v187 = vld [vmem:[%s185 + $0x8] sm:$0x3f]
        %s188 = sld [smem:[#allocation2]]
        %v189 = vstv %s188
        %v190 = vmul.f32 %v180, %v189
        %v191 = vmul.f32 %v181, %v189
        %s192 = sld [smem:[#allocation2 + $0x80]]
        %v193 = vstv %s192
        %v194 = vmul.f32 %v183, %v193
        %v195 = vmul.f32 %v184, %v193
        %v196 = vadd.f32 %v190, %v194
        %v197 = vadd.f32 %v191, %v195
        %s198 = sld [smem:[#allocation2 + $0x100]]
        %v199 = vstv %s198
        %v200 = vmul.f32 %v186, %v199
        %v201 = vmul.f32 %v187, %v199
        %v202 = vadd.f32 %v196, %v200
        %v203 = vadd.f32 %v197, %v201
        %s204 = sld [smem:[#allocation2 + $0x180]]
        %v205 = vstv %s204
        %v206 = vadd.f32 %v202, %v205
        %v207 = vadd.f32 %v203, %v205
        %s208 = sld [smem:[#allocation2 + $0x1]]
        %v209 = vstv %s208
        %v210 = vmul.f32 %v180, %v209
        %v211 = vmul.f32 %v181, %v209
        %s212 = sld [smem:[#allocation2 + $0x81]]
        %v213 = vstv %s212
        %v214 = vmul.f32 %v183, %v213
        %v215 = vmul.f32 %v184, %v213
        %v216 = vadd.f32 %v210, %v214
        %v217 = vadd.f32 %v211, %v215
        %s218 = sld [smem:[#allocation2 + $0x101]]
        %v219 = vstv %s218
        %v220 = vmul.f32 %v186, %v219
        %v221 = vmul.f32 %v187, %v219
        %v222 = vadd.f32 %v216, %v220
        %v223 = vadd.f32 %v217, %v221
        %s224 = sld [smem:[#allocation2 + $0x181]]
        %v225 = vstv %s224
        %v226 = vadd.f32 %v222, %v225
        %v227 = vadd.f32 %v223, %v225
        %s228 = sld [smem:[#allocation2 + $0x2]]
        %v229 = vstv %s228
        %v230 = vmul.f32 %v180, %v229
        %v231 = vmul.f32 %v181, %v229
        %s232 = sld [smem:[#allocation2 + $0x82]]
        %v233 = vstv %s232
        %v234 = vmul.f32 %v183, %v233
        %v235 = vmul.f32 %v184, %v233
        %v236 = vadd.f32 %v230, %v234
        %v237 = vadd.f32 %v231, %v235
        %s238 = sld [smem:[#allocation2 + $0x102]]
        %v239 = vstv %s238
        %v240 = vmul.f32 %v186, %v239
        %v241 = vmul.f32 %v187, %v239
        %v242 = vadd.f32 %v236, %v240
        %v243 = vadd.f32 %v237, %v241
        %s244 = sld [smem:[#allocation2 + $0x182]]
        %v245 = vstv %s244
        %v246 = vadd.f32 %v242, %v245
        %v247 = vadd.f32 %v243, %v245
        %s248 = sld [smem:[#allocation2 + $0x3]]
        %v249 = vstv %s248
        %v250 = vmul.f32 %v180, %v249
        %v251 = vmul.f32 %v181, %v249
        %s252 = sld [smem:[#allocation2 + $0x83]]
        %v253 = vstv %s252
        %v254 = vmul.f32 %v183, %v253
        %v255 = vmul.f32 %v184, %v253
        %v256 = vadd.f32 %v250, %v254
        %v257 = vadd.f32 %v251, %v255
        %s258 = sld [smem:[#allocation2 + $0x103]]
        %v259 = vstv %s258
        %v260 = vmul.f32 %v186, %v259
        %v261 = vmul.f32 %v187, %v259
        %v262 = vadd.f32 %v256, %v260
        %v263 = vadd.f32 %v257, %v261
        %s264 = sld [smem:[#allocation2 + $0x183]]
        %v265 = vstv %s264
        %v266 = vadd.f32 %v262, %v265
        %v267 = vadd.f32 %v263, %v265
        %s268 = sld [smem:[#allocation2 + $0x200]]
        %v269 = vstv %s268
        %v270 = vmul.f32 %v246, %v269
        %v271 = vmul.f32 %v247, %v269
        %s272 = sld [smem:[#allocation2 + $0x280]]
        %v273 = vstv %s272
        %v274 = vmul.f32 %v246, %v273
        %v275 = vmul.f32 %v247, %v273
        %v278 = vrot.slane %v274, 1
        %v279 = vrot.slane %v275, 1
        %v282 = vadd.f32 %v270, %v278
        %v283 = vadd.f32 %v271, %v279
        %s284 = sld [smem:[#allocation2 + $0x300]]
        %v285 = vstv %s284
        %v286 = vmul.f32 %v246, %v285
        %v287 = vmul.f32 %v247, %v285
        %v290 = vrot.slane %v286, 2
        %v291 = vrot.slane %v287, 2
        %v294 = vadd.f32 %v282, %v290
        %v295 = vadd.f32 %v283, %v291
        %s296 = sld [smem:[#allocation2 + $0x380]]
        %v297 = vstv %s296
        %v298 = vmul.f32 %v246, %v297
        %v299 = vmul.f32 %v247, %v297
        %v302 = vrot.slane %v298, 3
        %v303 = vrot.slane %v299, 3
        %v306 = vadd.f32 %v294, %v302
        %v307 = vadd.f32 %v295, %v303
        %s308 = sld [smem:[#allocation2 + $0x400]]
        %v309 = vstv %s308
        %v310 = vmul.f32 %v246, %v309
        %v311 = vmul.f32 %v247, %v309
        %v314 = vrot.slane %v310, 4
        %v315 = vrot.slane %v311, 4
        %v318 = vadd.f32 %v306, %v314
        %v319 = vadd.f32 %v307, %v315
        %s320 = sld [smem:[#allocation2 + $0x480]]
        %v321 = vstv %s320
        %v322 = vmul.f32 %v246, %v321
        %v323 = vmul.f32 %v247, %v321
        %v326 = vrot.slane %v322, 5
        %v327 = vrot.slane %v323, 5
        %v330 = vadd.f32 %v318, %v326
        %v331 = vadd.f32 %v319, %v327
        %v332 = vlaneseq
        %v333 = vshrl.u32 %v332, 7
        %v334 = vsub.s32 0, %v333
        %v335 = vrot.slane %v330, %v334
        %v336 = vlaneseq
        %v337 = vshrl.u32 %v336, 7
        %v338 = vsub.s32 0, %v337
        %v339 = vrot.slane %v331, %v338
        %v340 = vmul.f32 %v206, %v335
        %v341 = vmul.f32 %v207, %v339
        %v342 = vmul.f32 %v266, %v269
        %v343 = vmul.f32 %v267, %v269
        %v344 = vmul.f32 %v266, %v273
        %v345 = vmul.f32 %v267, %v273
        %v348 = vrot.slane %v344, 1
        %v349 = vrot.slane %v345, 1
        %v352 = vadd.f32 %v342, %v348
        %v353 = vadd.f32 %v343, %v349
        %v354 = vmul.f32 %v266, %v285
        %v355 = vmul.f32 %v267, %v285
        %v358 = vrot.slane %v354, 2
        %v359 = vrot.slane %v355, 2
        %v362 = vadd.f32 %v352, %v358
        %v363 = vadd.f32 %v353, %v359
        %v364 = vmul.f32 %v266, %v297
        %v365 = vmul.f32 %v267, %v297
        %v368 = vrot.slane %v364, 3
        %v369 = vrot.slane %v365, 3
        %v372 = vadd.f32 %v362, %v368
        %v373 = vadd.f32 %v363, %v369
        %v374 = vmul.f32 %v266, %v309
        %v375 = vmul.f32 %v267, %v309
        %v378 = vrot.slane %v374, 4
        %v379 = vrot.slane %v375, 4
        %v382 = vadd.f32 %v372, %v378
        %v383 = vadd.f32 %v373, %v379
        %v384 = vmul.f32 %v266, %v321
        %v385 = vmul.f32 %v267, %v321
        %v388 = vrot.slane %v384, 5
        %v389 = vrot.slane %v385, 5
        %v392 = vadd.f32 %v382, %v388
        %v393 = vadd.f32 %v383, %v389
        %v394 = vlaneseq
        %v395 = vshrl.u32 %v394, 7
        %v396 = vsub.s32 0, %v395
        %v397 = vrot.slane %v392, %v396
        %v398 = vlaneseq
        %v399 = vshrl.u32 %v398, 7
        %v400 = vsub.s32 0, %v399
        %v401 = vrot.slane %v393, %v400
        %v402 = vmul.f32 %v226, %v397
        %v403 = vmul.f32 %v227, %v401
        %v404 = vadd.f32 %v340, %v402
        %v405 = vadd.f32 %v341, %v403
        %s406 = sld [smem:[#allocation2 + $0x500]]
        %v407 = vstv %s406
        %v408 = vadd.f32 %v404, %v407
        %v409 = vadd.f32 %v405, %v407
        %s410 = sld [smem:[#allocation2 + $0x201]]
        %v411 = vstv %s410
        %v412 = vmul.f32 %v246, %v411
        %v413 = vmul.f32 %v247, %v411
        %s414 = sld [smem:[#allocation2 + $0x281]]
        %v415 = vstv %s414
        %v416 = vmul.f32 %v246, %v415
        %v417 = vmul.f32 %v247, %v415
        %v420 = vrot.slane %v416, 1
        %v421 = vrot.slane %v417, 1
        %v424 = vadd.f32 %v412, %v420
        %v425 = vadd.f32 %v413, %v421
        %s426 = sld [smem:[#allocation2 + $0x301]]
        %v427 = vstv %s426
        %v428 = vmul.f32 %v246, %v427
        %v429 = vmul.f32 %v247, %v427
        %v432 = vrot.slane %v428, 2
        %v433 = vrot.slane %v429, 2
        %v436 = vadd.f32 %v424, %v432
        %v437 = vadd.f32 %v425, %v433
        %s438 = sld [smem:[#allocation2 + $0x381]]
        %v439 = vstv %s438
        %v440 = vmul.f32 %v246, %v439
        %v441 = vmul.f32 %v247, %v439
        %v444 = vrot.slane %v440, 3
        %v445 = vrot.slane %v441, 3
        %v448 = vadd.f32 %v436, %v444
        %v449 = vadd.f32 %v437, %v445
        %s450 = sld [smem:[#allocation2 + $0x401]]
        %v451 = vstv %s450
        %v452 = vmul.f32 %v246, %v451
        %v453 = vmul.f32 %v247, %v451
        %v456 = vrot.slane %v452, 4
        %v457 = vrot.slane %v453, 4
        %v460 = vadd.f32 %v448, %v456
        %v461 = vadd.f32 %v449, %v457
        %s462 = sld [smem:[#allocation2 + $0x481]]
        %v463 = vstv %s462
        %v464 = vmul.f32 %v246, %v463
        %v465 = vmul.f32 %v247, %v463
        %v468 = vrot.slane %v464, 5
        %v469 = vrot.slane %v465, 5
        %v472 = vadd.f32 %v460, %v468
        %v473 = vadd.f32 %v461, %v469
        %v474 = vlaneseq
        %v475 = vshrl.u32 %v474, 7
        %v476 = vsub.s32 0, %v475
        %v477 = vrot.slane %v472, %v476
        %v478 = vlaneseq
        %v479 = vshrl.u32 %v478, 7
        %v480 = vsub.s32 0, %v479
        %v481 = vrot.slane %v473, %v480
        %v482 = vmul.f32 %v206, %v477
        %v483 = vmul.f32 %v207, %v481
        %v484 = vmul.f32 %v266, %v411
        %v485 = vmul.f32 %v267, %v411
        %v486 = vmul.f32 %v266, %v415
        %v487 = vmul.f32 %v267, %v415
        %v490 = vrot.slane %v486, 1
        %v491 = vrot.slane %v487, 1
        %v494 = vadd.f32 %v484, %v490
        %v495 = vadd.f32 %v485, %v491
        %v496 = vmul.f32 %v266, %v427
        %v497 = vmul.f32 %v267, %v427
        %v500 = vrot.slane %v496, 2
        %v501 = vrot.slane %v497, 2
        %v504 = vadd.f32 %v494, %v500
        %v505 = vadd.f32 %v495, %v501
        %v506 = vmul.f32 %v266, %v439
        %v507 = vmul.f32 %v267, %v439
        %v510 = vrot.slane %v506, 3
        %v511 = vrot.slane %v507, 3
        %v514 = vadd.f32 %v504, %v510
        %v515 = vadd.f32 %v505, %v511
        %v516 = vmul.f32 %v266, %v451
        %v517 = vmul.f32 %v267, %v451
        %v520 = vrot.slane %v516, 4
        %v521 = vrot.slane %v517, 4
        %v524 = vadd.f32 %v514, %v520
        %v525 = vadd.f32 %v515, %v521
        %v526 = vmul.f32 %v266, %v463
        %v527 = vmul.f32 %v267, %v463
        %v530 = vrot.slane %v526, 5
        %v531 = vrot.slane %v527, 5
        %v534 = vadd.f32 %v524, %v530
        %v535 = vadd.f32 %v525, %v531
        %v536 = vlaneseq
        %v537 = vshrl.u32 %v536, 7
        %v538 = vsub.s32 0, %v537
        %v539 = vrot.slane %v534, %v538
        %v540 = vlaneseq
        %v541 = vshrl.u32 %v540, 7
        %v542 = vsub.s32 0, %v541
        %v543 = vrot.slane %v535, %v542
        %v544 = vmul.f32 %v226, %v539
        %v545 = vmul.f32 %v227, %v543
        %v546 = vadd.f32 %v482, %v544
        %v547 = vadd.f32 %v483, %v545
        %s548 = sld [smem:[#allocation2 + $0x501]]
        %v549 = vstv %s548
        %v550 = vadd.f32 %v546, %v549
        %v551 = vadd.f32 %v547, %v549
        %s552 = sld [smem:[#allocation2 + $0x202]]
        %v553 = vstv %s552
        %v554 = vmul.f32 %v246, %v553
        %v555 = vmul.f32 %v247, %v553
        %s556 = sld [smem:[#allocation2 + $0x282]]
        %v557 = vstv %s556
        %v558 = vmul.f32 %v246, %v557
        %v559 = vmul.f32 %v247, %v557
        %v562 = vrot.slane %v558, 1
        %v563 = vrot.slane %v559, 1
        %v566 = vadd.f32 %v554, %v562
        %v567 = vadd.f32 %v555, %v563
        %s568 = sld [smem:[#allocation2 + $0x302]]
        %v569 = vstv %s568
        %v570 = vmul.f32 %v246, %v569
        %v571 = vmul.f32 %v247, %v569
        %v574 = vrot.slane %v570, 2
        %v575 = vrot.slane %v571, 2
        %v578 = vadd.f32 %v566, %v574
        %v579 = vadd.f32 %v567, %v575
        %s580 = sld [smem:[#allocation2 + $0x382]]
        %v581 = vstv %s580
        %v582 = vmul.f32 %v246, %v581
        %v583 = vmul.f32 %v247, %v581
        %v586 = vrot.slane %v582, 3
        %v587 = vrot.slane %v583, 3
        %v590 = vadd.f32 %v578, %v586
        %v591 = vadd.f32 %v579, %v587
        %s592 = sld [smem:[#allocation2 + $0x402]]
        %v593 = vstv %s592
        %v594 = vmul.f32 %v246, %v593
        %v595 = vmul.f32 %v247, %v593
        %v598 = vrot.slane %v594, 4
        %v599 = vrot.slane %v595, 4
        %v602 = vadd.f32 %v590, %v598
        %v603 = vadd.f32 %v591, %v599
        %s604 = sld [smem:[#allocation2 + $0x482]]
        %v605 = vstv %s604
        %v606 = vmul.f32 %v246, %v605
        %v607 = vmul.f32 %v247, %v605
        %v610 = vrot.slane %v606, 5
        %v611 = vrot.slane %v607, 5
        %v614 = vadd.f32 %v602, %v610
        %v615 = vadd.f32 %v603, %v611
        %v616 = vlaneseq
        %v617 = vshrl.u32 %v616, 7
        %v618 = vsub.s32 0, %v617
        %v619 = vrot.slane %v614, %v618
        %v620 = vlaneseq
        %v621 = vshrl.u32 %v620, 7
        %v622 = vsub.s32 0, %v621
        %v623 = vrot.slane %v615, %v622
        %v624 = vmul.f32 %v206, %v619
        %v625 = vmul.f32 %v207, %v623
        %v626 = vmul.f32 %v266, %v553
        %v627 = vmul.f32 %v267, %v553
        %v628 = vmul.f32 %v266, %v557
        %v629 = vmul.f32 %v267, %v557
        %v632 = vrot.slane %v628, 1
        %v633 = vrot.slane %v629, 1
        %v636 = vadd.f32 %v626, %v632
        %v637 = vadd.f32 %v627, %v633
        %v638 = vmul.f32 %v266, %v569
        %v639 = vmul.f32 %v267, %v569
        %v642 = vrot.slane %v638, 2
        %v643 = vrot.slane %v639, 2
        %v646 = vadd.f32 %v636, %v642
        %v647 = vadd.f32 %v637, %v643
        %v648 = vmul.f32 %v266, %v581
        %v649 = vmul.f32 %v267, %v581
        %v652 = vrot.slane %v648, 3
        %v653 = vrot.slane %v649, 3
        %v656 = vadd.f32 %v646, %v652
        %v657 = vadd.f32 %v647, %v653
        %v658 = vmul.f32 %v266, %v593
        %v659 = vmul.f32 %v267, %v593
        %v662 = vrot.slane %v658, 4
        %v663 = vrot.slane %v659, 4
        %v666 = vadd.f32 %v656, %v662
        %v667 = vadd.f32 %v657, %v663
        %v668 = vmul.f32 %v266, %v605
        %v669 = vmul.f32 %v267, %v605
        %v672 = vrot.slane %v668, 5
        %v673 = vrot.slane %v669, 5
        %v676 = vadd.f32 %v666, %v672
        %v677 = vadd.f32 %v667, %v673
        %v678 = vlaneseq
        %v679 = vshrl.u32 %v678, 7
        %v680 = vsub.s32 0, %v679
        %v681 = vrot.slane %v676, %v680
        %v682 = vlaneseq
        %v683 = vshrl.u32 %v682, 7
        %v684 = vsub.s32 0, %v683
        %v685 = vrot.slane %v677, %v684
        %v686 = vmul.f32 %v226, %v681
        %v687 = vmul.f32 %v227, %v685
        %v688 = vadd.f32 %v624, %v686
        %v689 = vadd.f32 %v625, %v687
        %s690 = sld [smem:[#allocation2 + $0x502]]
        %v691 = vstv %s690
        %v692 = vadd.f32 %v688, %v691
        %v693 = vadd.f32 %v689, %v691
        %v694 = vmax.f32 %v408, %v550
        %v695 = vmax.f32 %v409, %v551
        %v696 = vmax.f32 %v694, %v692
        %v697 = vmax.f32 %v695, %v693
        %v698 = vsub.f32 %v408, %v696
        %v699 = vsub.f32 %v409, %v697
        %v700 = vmul.f32 %v698, 1.442695
        %v701 = vpow.pop %v700
        %v702 = vmul.f32 %v699, 1.442695
        %v703 = vpow.pop %v702
        %v704 = vsub.f32 %v550, %v696
        %v705 = vsub.f32 %v551, %v697
        %v706 = vmul.f32 %v704, 1.442695
        %v707 = vpow.pop %v706
        %v708 = vmul.f32 %v705, 1.442695
        %v709 = vpow.pop %v708
        %v710 = vsub.f32 %v692, %v696
        %v711 = vsub.f32 %v693, %v697
        %v712 = vmul.f32 %v710, 1.442695
        %v713 = vpow.pop %v712
        %v714 = vmul.f32 %v711, 1.442695
        %v715 = vpow.pop %v714
        %v716 = vadd.f32 %v701, %v707
        %v717 = vadd.f32 %v703, %v709
        %v718 = vadd.f32 %v716, %v713
        %v719 = vadd.f32 %v717, %v715
        %v720 = vrcp.pop %v718
        %v721 = vmul.f32 1.0, %v720
        %v722 = vrcp.pop %v719
        %v723 = vmul.f32 1.0, %v722
        %v724 = vmul.f32 %v701, %v721
        %v725 = vmul.f32 %v703, %v723
        %726 = vst [vmem:[%s177] sm:$0x3f] %v724
        %727 = vst [vmem:[%s177 + $0x8] sm:$0x3f] %v725
        %v728 = vmul.f32 %v707, %v721
        %v729 = vmul.f32 %v709, %v723
        %s730 = scalar_lea.vmem %s177, 16 [#allocation7]
        %731 = vst [vmem:[%s730] sm:$0x3f] %v728
        %732 = vst [vmem:[%s730 + $0x8] sm:$0x3f] %v729
        %v733 = vmul.f32 %v713, %v721
        %v734 = vmul.f32 %v715, %v723
        %s735 = scalar_lea.vmem %s177, 32 [#allocation7]
        %736 = vst [vmem:[%s735] sm:$0x3f] %v733
        %737 = vst [vmem:[%s735 + $0x8] sm:$0x3f] %v734
        %s738 = sand.u32 %s75, 1
        %s739 = scalar_lea.sflag [#allocation4], %s738
        %s740 = sand.u32 %s75, 1
        %s741 = smul.addr %s740, 48
        %s742 = scalar_lea.vmem [#allocation7], %s741
        // Predicated region
        $region37: #{tpu_custom_call.1} parent=27 // pred_check
          %p743 = pneg %p85
        $region38: #{tpu_custom_call.1} parent=27 // pred_check_branch
          %745 = sbr.rel (%p743) target = $region40
        $region39: #{tpu_custom_call.1} parent=27 // pred_region
          %s746 = smul.u32 2, %s20
          %s748 = ssub.s32 768, 768
          %749 = vsyncadd %s739, %s748
          %s750 = smul.addr %s746, 128
          %s751 = scalar_lea.hbm %s2, %s750
          %s752 = sshll.u32 %s742, 4
          %s753 = int_to_ptr.vmem [resolvable:$true] %s752
          %758 = dma.vmem_to_hbm [thread:$0]  %s753, 768, %s751, %s739, 256, 512, 16
        $region40: #{tpu_custom_call.1} parent=27 // pred_fallthru
          _
      $region28: #{tpu_custom_call.1} parent=5 // pred_fallthru
        _
      %p759 = scmp.le.s32.totalorder 2, %s15
      // Predicated region
      $region41: #{tpu_custom_call.1} parent=5 // pred_check
        %p760 = pneg %p759
      $region42: #{tpu_custom_call.1} parent=5 // pred_check_branch
        %762 = sbr.rel (%p760) target = $region44
      $region43: #{tpu_custom_call.1} parent=5 // pred_region
        %s763 = ssub.s32 %s15, 2
        // Predicated region
        $region45: #{tpu_custom_call.1} parent=43 // pred_check
          %p764 = pneg %p91
        $region46: #{tpu_custom_call.1} parent=43 // pred_check_branch
          %766 = sbr.rel (%p764) target = $region48
        $region47: #{tpu_custom_call.1} parent=43 // pred_region
          %s767 = sand.u32 %s76, 1
          %s768 = scalar_lea.sflag [#allocation4], %s767
          %s769 = sand.u32 %s76, 1
          %s770 = smul.addr %s769, 48
          %s771 = scalar_lea.vmem [#allocation7], %s770
          %772 = dma.done %s768, 768
        $region48: #{tpu_custom_call.1} parent=43 // pred_fallthru
          _
      $region44: #{tpu_custom_call.1} parent=5 // pred_fallthru
        _
    $region6: #{tpu_custom_call.1} parent=1 // loop_footer
      %s19 = sadd.s32 1, %s15
    $region7: #{tpu_custom_call.1} parent=1 // loop_footer_branch
      %14 = sbr.rel target = $region3
    $region8: #{tpu_custom_call.1} parent=1 // loop_exit
      _
    %773 = vsyncpa [#allocation3], 1
    %s774 = scalar_lea.sflag [#allocation3], 1
    %775 = vsyncpa %s774, 1
    %776 = vsyncpa [#allocation4], 1
    %s777 = scalar_lea.sflag [#allocation4], 1
    %778 = vsyncpa %s777, 1
    %779 = vsyncpa [#allocation5], 1
    %s780 = scalar_lea.sflag [#allocation5], 1
    %781 = vsyncpa %s780, 1

</llo_original>
